<compile_context>
chip_gen: v7x
topology: tpu7x:2x2x1
jax: 0.10.0
libtpu: 0.0.40
codegen_flags: <defaults>
</compile_context>

<pallas_src>
import functools

import jax
import jax.numpy as jnp
from jax import lax
from jax.experimental import pallas as pl
from jax.experimental.pallas import tpu as pltpu


# ----------------------------------------------------------------------------
# Plain-JAX glue: bilinear corner math for grid_sample(align_corners=False,
# padding_mode='zeros') with point coords in [0, 1].
# ----------------------------------------------------------------------------
def bilinear_corners(coords, H, W):
    """coords: (B, P, 2) in [0,1] with (x=width, y=height).
    Returns flat corner indices (B, 4, P) int32 (clipped in-range) and corner
    weights (B, 4, P) float32 with out-of-bounds corners zeroed (zero padding).
    Used by the gather-based reference path / sampling_points."""
    gx = 2.0 * coords[..., 0] - 1.0
    gy = 2.0 * coords[..., 1] - 1.0
    ix = ((gx + 1.0) * W - 1.0) * 0.5          # align_corners=False unnormalization
    iy = ((gy + 1.0) * H - 1.0) * 0.5
    ix0 = jnp.floor(ix)
    iy0 = jnp.floor(iy)
    ix1 = ix0 + 1.0
    iy1 = iy0 + 1.0
    wx1 = ix - ix0
    wx0 = 1.0 - wx1
    wy1 = iy - iy0
    wy0 = 1.0 - wy1

    def corner(ix_, iy_, w_):
        valid = (ix_ >= 0) & (ix_ <= W - 1) & (iy_ >= 0) & (iy_ <= H - 1)
        ixc = jnp.clip(ix_, 0, W - 1).astype(jnp.int32)
        iyc = jnp.clip(iy_, 0, H - 1).astype(jnp.int32)
        return iyc * W + ixc, w_ * valid.astype(w_.dtype)

    i00, w00 = corner(ix0, iy0, wx0 * wy0)
    i10, w10 = corner(ix1, iy0, wx1 * wy0)
    i01, w01 = corner(ix0, iy1, wx0 * wy1)
    i11, w11 = corner(ix1, iy1, wx1 * wy1)
    idx = jnp.stack([i00, i10, i01, i11], axis=1)            # (B, 4, P) int32
    wgt = jnp.stack([w00, w10, w01, w11], axis=1)            # (B, 4, P) f32
    return idx, wgt.astype(jnp.float32)


def bilinear_base_and_weights(coords, H, W):
    """Kernel-path corner math. coords: (B, P, 2) in [0,1].
    Returns:
      idx00: (B, P) int32 UNCLIPPED flat index of the top-left corner; the four
             corner flat indices are idx00 + {0, 1, W, W+1} (out-of-bounds corners
             carry zero weight, so aliased/negative indices are harmless),
      wgt:   (B, 4, P) f32 bilinear weights, zeroed for out-of-bounds corners."""
    gx = 2.0 * coords[..., 0] - 1.0
    gy = 2.0 * coords[..., 1] - 1.0
    ix = ((gx + 1.0) * W - 1.0) * 0.5
    iy = ((gy + 1.0) * H - 1.0) * 0.5
    ix0 = jnp.floor(ix)
    iy0 = jnp.floor(iy)
    ix1 = ix0 + 1.0
    iy1 = iy0 + 1.0
    wx1 = ix - ix0
    wx0 = 1.0 - wx1
    wy1 = iy - iy0
    wy0 = 1.0 - wy1
    vx0 = ((ix0 >= 0) & (ix0 <= W - 1)).astype(jnp.float32)
    vx1 = ((ix1 >= 0) & (ix1 <= W - 1)).astype(jnp.float32)
    vy0 = ((iy0 >= 0) & (iy0 <= H - 1)).astype(jnp.float32)
    vy1 = ((iy1 >= 0) & (iy1 <= H - 1)).astype(jnp.float32)
    w00 = wx0 * wy0 * vx0 * vy0
    w10 = wx1 * wy0 * vx1 * vy0
    w01 = wx0 * wy1 * vx0 * vy1
    w11 = wx1 * wy1 * vx1 * vy1
    idx00 = (iy0 * W + ix0).astype(jnp.int32)                # (B, P), may be negative
    wgt = jnp.stack([w00, w10, w01, w11], axis=1).astype(jnp.float32)
    return idx00, wgt


def point_sample(img, coords):
    """Gather-based bilinear sampling (reference / sampling_points path).
    img: (B, C, H, W); coords: (B, P, 2) in [0,1]. Returns (B, C, P)."""
    B, C, H, W = img.shape
    idx, wgt = bilinear_corners(coords, H, W)                # (B, 4, P)
    img_flat = img.reshape(B, C, H * W)
    out = 0.0
    for c in range(4):
        vals = jnp.take_along_axis(img_flat, idx[:, c][:, None, :], axis=2)  # (B,C,P)
        out = out + vals * wgt[:, c][:, None, :]
    return out


def sampling_points(key, mask, N, k=3, beta=0.75):
    """Training-mode sampling_points. mask: (B, C, H, W). Returns (B, N, 2)."""
    B, C, H, W = mask.shape
    k1, k2 = jax.random.split(key)
    # Sort channels descending; only the top-2 channels feed the uncertainty map.
    mask_sorted = -jnp.sort(-mask, axis=1)
    over_gen = jax.random.uniform(k1, (B, k * N, 2), dtype=mask.dtype)
    og_map = point_sample(mask_sorted[:, :2], over_gen)          # (B, 2, kN)
    uncertainty = -1.0 * (og_map[:, 0] - og_map[:, 1])           # (B, kN)
    n_imp = int(beta * N)
    _, idx = jax.lax.top_k(uncertainty, n_imp)                   # (B, n_imp)
    importance = jnp.take_along_axis(over_gen, idx[..., None], axis=1)   # (B, n_imp, 2)
    coverage = jax.random.uniform(k2, (B, N - n_imp, 2), dtype=mask.dtype)
    return jnp.concatenate([importance, coverage], axis=1)


# ----------------------------------------------------------------------------
# Pallas kernel: per-batch fused (1x1 Conv projection) -> (bilinear point-sample as a
# one-hot-weight matmul) -> bias add.  Grid = (B,) marked "parallel".
# ----------------------------------------------------------------------------
def _pointhead_kernel(pred_ref, feat_ref, idx_ref, wgt_ref, wp_ref, wf_ref,
                      bias_ref, out_ref, *, width):
    """
    pred_ref: (1, Cp, HW) f32  -- bb_pred for this batch, native (C, H*W) view
    feat_ref: (1, Cf, HW) f32  -- bb_feature for this batch
    idx_ref : (1, 1, P)   i32  -- unclipped flat index of the top-left corner
    wgt_ref : (1, 4, P)   f32  -- bilinear corner weights (0 where OOB)
    wp_ref  : (O, Cp)     f32  -- Conv1d weight slice for bb_pred channels
    wf_ref  : (O, Cf)     f32  -- Conv1d weight slice for bb_feature channels
    bias_ref: (O, 1)      f32  -- Conv1d bias (broadcast add)
    out_ref : (1, O, P)   f32  -- point_pred for this batch
    """
    hw = pred_ref.shape[-1]
    p = out_ref.shape[-1]

    # 1) Channel projection FIRST (associativity: W @ (img @ sel) == (W @ img) @ sel).
    #    The channel concat is realized as the sum of the two per-image projections.
    proj = jnp.dot(wp_ref[...], pred_ref[0], preferred_element_type=jnp.float32)
    proj = proj + jnp.dot(wf_ref[...], feat_ref[0],
                          preferred_element_type=jnp.float32)            # (O, HW)

    # 2) Build the (HW, P) bilinear selection matrix: one delta against the top-left
    #    corner index, then select among the 4 corner weights at the static offsets
    #    {0, 1, W, W+1}.  Each cell matches at most one corner; OOB corners carry
    #    zero weight so aliased/out-of-range deltas are harmless.
    row = lax.broadcasted_iota(jnp.int32, (hw, p), 0)
    d = row - idx_ref[0]                                                 # (HW, P)
    w = wgt_ref[0]                                                       # (4, P)
    sel = jnp.where(d == 0, w[0:1, :], 0.0)
    sel = jnp.where(d == 1, w[1:2, :], sel)
    sel = jnp.where(d == width, w[2:3, :], sel)
    sel = jnp.where(d == width + 1, w[3:4, :], sel)

    # 3) Sample the projected channels with one small MXU matmul + broadcast bias add.
    acc = jnp.dot(proj, sel, preferred_element_type=jnp.float32)         # (O, P)
    out_ref[0] = (acc + bias_ref[...]).astype(out_ref.dtype)


def point_head_mlp_pallas(bb_pred, bb_feature, points, mlp_weight, mlp_bias):
    """Fused point_sample(bb_pred) + point_sample(bb_feature) + concat + Conv1d(1x1).
    Returns point_pred of shape (B, num_classes, P)."""
    B, Cp, H, W = bb_pred.shape
    Cf = bb_feature.shape[1]
    assert bb_feature.shape[2:] == (H, W), "fused path assumes matching spatial dims"
    P = points.shape[1]
    O, in_c = mlp_weight.shape
    assert in_c == Cp + Cf
    HW = H * W

    # Bilinear corner base indices/weights (pure elementwise XLA, no gathers).
    idx00, wgt = bilinear_base_and_weights(points, H, W)       # (B, P) i32, (B, 4, P)
    idx00 = idx00[:, None, :]                                  # (B, 1, P)

    # Native contiguous (B, C, HW) views -- free reshapes, no concat / transpose copy.
    pred2 = bb_pred.reshape(B, Cp, HW)
    feat2 = bb_feature.reshape(B, Cf, HW)
    wp = mlp_weight[:, :Cp]                                    # (O, Cp)
    wf = mlp_weight[:, Cp:]                                    # (O, Cf)
    bias2 = mlp_bias.reshape(O, 1).astype(jnp.float32)         # (O, 1)

    # NOTE: at this toy size P=64 (<128) so output stores are lane-masked; production
    # N = (x.shape[-1]//2)^2 is a multiple of 128 and stores become dense.
    kernel = functools.partial(_pointhead_kernel, width=W)
    out = pl.pallas_call(
        kernel,
        out_shape=jax.ShapeDtypeStruct((B, O, P), bb_pred.dtype),
        grid=(B,),
        in_specs=[
            pl.BlockSpec((1, Cp, HW), lambda b: (b, 0, 0)),    # pred2
            pl.BlockSpec((1, Cf, HW), lambda b: (b, 0, 0)),    # feat2
            pl.BlockSpec((1, 1, P), lambda b: (b, 0, 0)),      # idx00
            pl.BlockSpec((1, 4, P), lambda b: (b, 0, 0)),      # wgt
            pl.BlockSpec((O, Cp), lambda b: (0, 0)),           # W[:, :Cp]
            pl.BlockSpec((O, Cf), lambda b: (0, 0)),           # W[:, Cp:]
            pl.BlockSpec((O, 1), lambda b: (0, 0)),            # bias
        ],
        out_specs=pl.BlockSpec((1, O, P), lambda b: (b, 0, 0)),
        compiler_params=pltpu.CompilerParams(
            dimension_semantics=("parallel",)),
    )(pred2, feat2, idx00, wgt, wp, wf, bias2)

    return out                                                 # (B, O, P)


# ----------------------------------------------------------------------------
# PointHead forward (training path)
# ----------------------------------------------------------------------------
@functools.partial(jax.jit, static_argnames=("k", "beta"))
def point_head_forward(key, x, bb_feature, bb_pred, mlp_weight, mlp_bias,
                       k=3, beta=0.75):
    N = (x.shape[-1] // 2) ** 2
    points = sampling_points(key, bb_pred, N, k=k, beta=beta)          # (B, N, 2)
    point_pred = point_head_mlp_pallas(bb_pred, bb_feature, points,
                                       mlp_weight, mlp_bias)           # (B, O, N)
    return {"point_pred": point_pred, "points": points}


if __name__ == "__main__":
    # Small shapes consistent with the module:
    #   num_classes = 4 -> bb_pred channels = 4; bb_feature channels = 28 -> in_c = 32
    #   spatial 16x16, batch 2; x contributes its width -> N = (16 // 2)^2 = 64
    B, NUM_CLASSES, CF, H, W = 2, 4, 28, 16, 16
    IN_C = NUM_CLASSES + CF

    root = jax.random.PRNGKey(0)
    k_x, k_feat, k_pred, k_w, k_b, k_fwd = jax.random.split(root, 6)

    x = jax.random.normal(k_x, (B, NUM_CLASSES, H, W), dtype=jnp.float32)
    bb_feature = jax.random.normal(k_feat, (B, CF, H, W), dtype=jnp.float32)
    bb_pred = jax.random.normal(k_pred, (B, NUM_CLASSES, H, W), dtype=jnp.float32)

    # Deterministic Conv1d(in_c, num_classes, 1) parameters.
    mlp_weight = 0.05 * jax.random.normal(k_w, (NUM_CLASSES, IN_C), dtype=jnp.float32)
    mlp_bias = 0.5 * jax.random.normal(k_b, (NUM_CLASSES,), dtype=jnp.float32)

    out = point_head_forward(k_fwd, x, bb_feature, bb_pred, mlp_weight, mlp_bias)
    out = jax.block_until_ready(out)

    # Reference: gather-based bilinear sampling + dense einsum (independent of the
    # kernel's project-then-sample one-hot-matmul formulation).  Default MXU precision
    # uses bf16 passes, so allow small reassociation/precision differences; real
    # index/layout/bias bugs show up at O(0.1+).
    points = out["points"]
    coarse_ref = point_sample(bb_pred, points)
    fine_ref = point_sample(bb_feature, points)
    feat_ref = jnp.concatenate([coarse_ref, fine_ref], axis=1)          # (B, in_c, N)
    ref = jnp.einsum("oc,bcp->bop", mlp_weight, feat_ref) + mlp_bias[None, :, None]

    assert out["point_pred"].shape == (B, NUM_CLASSES, (W // 2) ** 2)
    assert out["points"].shape == (B, (W // 2) ** 2, 2)
    err = float(jnp.max(jnp.abs(out["point_pred"] - ref)))
    assert err < 2e-2, f"max abs err vs reference: {err}"

    print("KERNEL_OK")
</pallas_src>

<mosaic_0001>
module attributes {stable_mosaic.version = 11 : i64} {
  func.func @_pointhead_kernel(%arg0: i32, %arg1: memref<1x4x256xf32, #tpu.memory_space<vmem>>, %arg2: memref<1x28x256xf32, #tpu.memory_space<vmem>>, %arg3: memref<1x1x64xi32, #tpu.memory_space<vmem>>, %arg4: memref<1x4x64xf32, #tpu.memory_space<vmem>>, %arg5: memref<4x4xf32, #tpu.memory_space<vmem>>, %arg6: memref<4x28xf32, #tpu.memory_space<vmem>>, %arg7: memref<4x1xf32, #tpu.memory_space<vmem>>, %arg8: memref<1x4x64xf32, #tpu.memory_space<vmem>>) attributes {dimension_semantics = [#tpu.dimension_semantics<parallel>], iteration_bounds = array<i64: 2>, scalar_prefetch = 0 : i64, scratch_operands = 0 : i64, tpu.core_type = #tpu.core_type<tc>, window_params = [{transform_indices = @transform_0, window_bounds = array<i64: 1, 4, 256>}, {transform_indices = @transform_1, window_bounds = array<i64: 1, 28, 256>}, {transform_indices = @transform_2, window_bounds = array<i64: 1, 1, 64>}, {transform_indices = @transform_3, window_bounds = array<i64: 1, 4, 64>}, {pipeline_mode = #tpu.pipeline_mode<synchronous>, transform_indices = @transform_4, window_bounds = array<i64: 4, 4>}, {pipeline_mode = #tpu.pipeline_mode<synchronous>, transform_indices = @transform_5, window_bounds = array<i64: 4, 28>}, {pipeline_mode = #tpu.pipeline_mode<synchronous>, transform_indices = @transform_6, window_bounds = array<i64: 4, 1>}, {transform_indices = @transform_7, window_bounds = array<i64: 1, 4, 64>}]} {
    %c0 = arith.constant 0 : index
    %c0_0 = arith.constant 0 : index
    %0 = vector.load %arg5[%c0, %c0_0] : memref<4x4xf32, #tpu.memory_space<vmem>>, vector<4x4xf32>
    %c0_1 = arith.constant 0 : index
    %c0_2 = arith.constant 0 : index
    %c0_3 = arith.constant 0 : index
    %1 = vector.load %arg1[%c0_1, %c0_2, %c0_3] : memref<1x4x256xf32, #tpu.memory_space<vmem>>, vector<1x4x256xf32>
    %2 = vector.shape_cast %1 : vector<1x4x256xf32> to vector<4x256xf32>
    %cst = arith.constant dense<0.000000e+00> : vector<4x256xf32>
    %3 = tpu.matmul %0, %2, %cst {dimension_numbers = #tpu.dot_dimension_numbers<[1], [0], [0], [1], [0, 0, 1, 1], [], []>} : vector<4x4xf32>, vector<4x256xf32>, vector<4x256xf32> -> vector<4x256xf32>
    %c0_4 = arith.constant 0 : index
    %c0_5 = arith.constant 0 : index
    %4 = vector.load %arg6[%c0_4, %c0_5] : memref<4x28xf32, #tpu.memory_space<vmem>>, vector<4x28xf32>
    %c0_6 = arith.constant 0 : index
    %c0_7 = arith.constant 0 : index
    %c0_8 = arith.constant 0 : index
    %5 = vector.load %arg2[%c0_6, %c0_7, %c0_8] : memref<1x28x256xf32, #tpu.memory_space<vmem>>, vector<1x28x256xf32>
    %6 = vector.shape_cast %5 : vector<1x28x256xf32> to vector<28x256xf32>
    %cst_9 = arith.constant dense<0.000000e+00> : vector<4x256xf32>
    %7 = tpu.matmul %4, %6, %cst_9 {dimension_numbers = #tpu.dot_dimension_numbers<[1], [0], [0], [1], [0, 0, 1, 1], [], []>} : vector<4x28xf32>, vector<28x256xf32>, vector<4x256xf32> -> vector<4x256xf32>
    %8 = arith.addf %3, %7 : vector<4x256xf32>
    %9 = tpu.iota {dimensions = array<i32: 0>} : vector<256x64xi32>
    %c0_10 = arith.constant 0 : index
    %c0_11 = arith.constant 0 : index
    %c0_12 = arith.constant 0 : index
    %10 = vector.load %arg3[%c0_10, %c0_11, %c0_12] : memref<1x1x64xi32, #tpu.memory_space<vmem>>, vector<1x1x64xi32>
    %11 = vector.shape_cast %10 : vector<1x1x64xi32> to vector<1x64xi32>
    %12 = vector.broadcast %11 : vector<1x64xi32> to vector<256x64xi32>
    %13 = arith.subi %9, %12 : vector<256x64xi32>
    %c0_13 = arith.constant 0 : index
    %c0_14 = arith.constant 0 : index
    %c0_15 = arith.constant 0 : index
    %14 = vector.load %arg4[%c0_13, %c0_14, %c0_15] : memref<1x4x64xf32, #tpu.memory_space<vmem>>, vector<1x4x64xf32>
    %15 = vector.shape_cast %14 : vector<1x4x64xf32> to vector<4x64xf32>
    %c0_i32 = arith.constant 0 : i32
    %16 = vector.broadcast %c0_i32 : i32 to vector<256x64xi32>
    %17 = arith.cmpi eq, %13, %16 : vector<256x64xi32>
    %18 = vector.extract_strided_slice %15 {offsets = [0, 0], sizes = [1, 64], strides = [1, 1]} : vector<4x64xf32> to vector<1x64xf32>
    %cst_16 = arith.constant 0.000000e+00 : f32
    %19 = vector.shape_cast %18 : vector<1x64xf32> to vector<1x64xf32>
    %20 = vector.broadcast %19 : vector<1x64xf32> to vector<256x64xf32>
    %21 = vector.broadcast %cst_16 : f32 to vector<256x64xf32>
    %22 = arith.select %17, %20, %21 : vector<256x64xi1>, vector<256x64xf32>
    %c1_i32 = arith.constant 1 : i32
    %23 = vector.broadcast %c1_i32 : i32 to vector<256x64xi32>
    %24 = arith.cmpi eq, %13, %23 : vector<256x64xi32>
    %25 = vector.extract_strided_slice %15 {offsets = [1, 0], sizes = [1, 64], strides = [1, 1]} : vector<4x64xf32> to vector<1x64xf32>
    %26 = vector.shape_cast %25 : vector<1x64xf32> to vector<1x64xf32>
    %27 = vector.broadcast %26 : vector<1x64xf32> to vector<256x64xf32>
    %28 = arith.select %24, %27, %22 : vector<256x64xi1>, vector<256x64xf32>
    %c16_i32 = arith.constant 16 : i32
    %29 = vector.broadcast %c16_i32 : i32 to vector<256x64xi32>
    %30 = arith.cmpi eq, %13, %29 : vector<256x64xi32>
    %31 = vector.extract_strided_slice %15 {offsets = [2, 0], sizes = [1, 64], strides = [1, 1]} : vector<4x64xf32> to vector<1x64xf32>
    %32 = vector.shape_cast %31 : vector<1x64xf32> to vector<1x64xf32>
    %33 = vector.broadcast %32 : vector<1x64xf32> to vector<256x64xf32>
    %34 = arith.select %30, %33, %28 : vector<256x64xi1>, vector<256x64xf32>
    %c17_i32 = arith.constant 17 : i32
    %35 = vector.broadcast %c17_i32 : i32 to vector<256x64xi32>
    %36 = arith.cmpi eq, %13, %35 : vector<256x64xi32>
    %37 = vector.extract_strided_slice %15 {offsets = [3, 0], sizes = [1, 64], strides = [1, 1]} : vector<4x64xf32> to vector<1x64xf32>
    %38 = vector.shape_cast %37 : vector<1x64xf32> to vector<1x64xf32>
    %39 = vector.broadcast %38 : vector<1x64xf32> to vector<256x64xf32>
    %40 = arith.select %36, %39, %34 : vector<256x64xi1>, vector<256x64xf32>
    %cst_17 = arith.constant dense<0.000000e+00> : vector<4x64xf32>
    %41 = tpu.matmul %8, %40, %cst_17 {dimension_numbers = #tpu.dot_dimension_numbers<[1], [0], [0], [1], [0, 0, 1, 1], [], []>} : vector<4x256xf32>, vector<256x64xf32>, vector<4x64xf32> -> vector<4x64xf32>
    %c0_18 = arith.constant 0 : index
    %c0_19 = arith.constant 0 : index
    %42 = vector.load %arg7[%c0_18, %c0_19] : memref<4x1xf32, #tpu.memory_space<vmem>>, vector<4x1xf32>
    %43 = vector.broadcast %42 : vector<4x1xf32> to vector<4x64xf32>
    %44 = arith.addf %41, %43 : vector<4x64xf32>
    %c0_20 = arith.constant 0 : index
    %c0_21 = arith.constant 0 : index
    %c0_22 = arith.constant 0 : index
    %45 = vector.load %arg8[%c0_20, %c0_21, %c0_22] : memref<1x4x64xf32, #tpu.memory_space<vmem>>, vector<1x4x64xf32>
    %46 = vector.shape_cast %45 : vector<1x4x64xf32> to vector<4x64xf32>
    %47 = vector.shape_cast %44 : vector<4x64xf32> to vector<1x4x64xf32>
    tpu.vector_store %arg8[%c0_20, %c0_21, %c0_22], %47 {strides = array<i32>} : memref<1x4x64xf32, #tpu.memory_space<vmem>>, vector<1x4x64xf32>,
    return
  }
  func.func @transform_0(%arg0: i32) -> (i32, i32, i32) {
    %c0_i32 = arith.constant 0 : i32
    %c0_i32_0 = arith.constant 0 : i32
    %c0_i32_1 = arith.constant 0 : i32
    return %arg0, %c0_i32, %c0_i32_0 : i32, i32, i32
  }
  func.func @transform_1(%arg0: i32) -> (i32, i32, i32) {
    %c0_i32 = arith.constant 0 : i32
    %c0_i32_0 = arith.constant 0 : i32
    %c0_i32_1 = arith.constant 0 : i32
    return %arg0, %c0_i32, %c0_i32_0 : i32, i32, i32
  }
  func.func @transform_2(%arg0: i32) -> (i32, i32, i32) {
    %c0_i32 = arith.constant 0 : i32
    %c0_i32_0 = arith.constant 0 : i32
    %c0_i32_1 = arith.constant 0 : i32
    return %arg0, %c0_i32, %c0_i32_0 : i32, i32, i32
  }
  func.func @transform_3(%arg0: i32) -> (i32, i32, i32) {
    %c0_i32 = arith.constant 0 : i32
    %c0_i32_0 = arith.constant 0 : i32
    %c0_i32_1 = arith.constant 0 : i32
    return %arg0, %c0_i32, %c0_i32_0 : i32, i32, i32
  }
  func.func @transform_4(%arg0: i32) -> (i32, i32) {
    %c0_i32 = arith.constant 0 : i32
    %c0_i32_0 = arith.constant 0 : i32
    %c0_i32_1 = arith.constant 0 : i32
    return %c0_i32, %c0_i32_0 : i32, i32
  }
  func.func @transform_5(%arg0: i32) -> (i32, i32) {
    %c0_i32 = arith.constant 0 : i32
    %c0_i32_0 = arith.constant 0 : i32
    %c0_i32_1 = arith.constant 0 : i32
    return %c0_i32, %c0_i32_0 : i32, i32
  }
  func.func @transform_6(%arg0: i32) -> (i32, i32) {
    %c0_i32 = arith.constant 0 : i32
    %c0_i32_0 = arith.constant 0 : i32
    %c0_i32_1 = arith.constant 0 : i32
    return %c0_i32, %c0_i32_0 : i32, i32
  }
  func.func @transform_7(%arg0: i32) -> (i32, i32, i32) {
    %c0_i32 = arith.constant 0 : i32
    %c0_i32_0 = arith.constant 0 : i32
    %c0_i32_1 = arith.constant 0 : i32
    return %arg0, %c0_i32, %c0_i32_0 : i32, i32, i32
  }
}

</mosaic_0001>

<llo_original>
// kernel: neg.2
$region0: #{neg.2}
  #allocation0 [shape = 's32[1]{0}', space=sflag, size = 0x4, scoped, tag = 'scoped memory for neg.2']
  %s0 = inlined_call_operand.vmem [shape: f32[2,4,16,16], index: 0, kind: input, shape index: {}]
  %s1 = inlined_call_operand.vmem [shape: f32[2,4,16,16], index: 1, kind: output, shape index: {}]
  %v2 = vld [vmem:[%s0] sm:$0xff]
  %3 = xla_tuple %v2
  %4 = xla_tuple %3
  %v5 = vxor.u32 %v2, 2147483648
  %6 = xla_tuple %v5
  %7 = vst [vmem:[%s1] sm:$0xff] %v5
  %s8 = scalar_lea.vmem %s0, 64
  %v9 = vld [vmem:[%s8] sm:$0xff]
  %10 = xla_tuple %v9
  %11 = xla_tuple %10
  %v12 = vxor.u32 %v9, 2147483648
  %13 = xla_tuple %v12
  %s14 = scalar_lea.vmem %s1, 64
  %15 = vst [vmem:[%s14] sm:$0xff] %v12
  %s16 = scalar_lea.vmem %s0, 16
  %v17 = vld [vmem:[%s16] sm:$0xff]
  %18 = xla_tuple %v17
  %19 = xla_tuple %18
  %v20 = vxor.u32 %v17, 2147483648
  %21 = xla_tuple %v20
  %s22 = scalar_lea.vmem %s1, 16
  %23 = vst [vmem:[%s22] sm:$0xff] %v20
  %s24 = scalar_lea.vmem %s0, 80
  %v25 = vld [vmem:[%s24] sm:$0xff]
  %26 = xla_tuple %v25
  %27 = xla_tuple %26
  %v28 = vxor.u32 %v25, 2147483648
  %29 = xla_tuple %v28
  %s30 = scalar_lea.vmem %s1, 80
  %31 = vst [vmem:[%s30] sm:$0xff] %v28
  %s32 = scalar_lea.vmem %s0, 32
  %v33 = vld [vmem:[%s32] sm:$0xff]
  %34 = xla_tuple %v33
  %35 = xla_tuple %34
  %v36 = vxor.u32 %v33, 2147483648
  %37 = xla_tuple %v36
  %s38 = scalar_lea.vmem %s1, 32
  %39 = vst [vmem:[%s38] sm:$0xff] %v36
  %s40 = scalar_lea.vmem %s0, 96
  %v41 = vld [vmem:[%s40] sm:$0xff]
  %42 = xla_tuple %v41
  %43 = xla_tuple %42
  %v44 = vxor.u32 %v41, 2147483648
  %45 = xla_tuple %v44
  %s46 = scalar_lea.vmem %s1, 96
  %47 = vst [vmem:[%s46] sm:$0xff] %v44
  %s48 = scalar_lea.vmem %s0, 48
  %v49 = vld [vmem:[%s48] sm:$0xff]
  %50 = xla_tuple %v49
  %51 = xla_tuple %50
  %v52 = vxor.u32 %v49, 2147483648
  %53 = xla_tuple %v52
  %s54 = scalar_lea.vmem %s1, 48
  %55 = vst [vmem:[%s54] sm:$0xff] %v52
  %s56 = scalar_lea.vmem %s0, 112
  %v57 = vld [vmem:[%s56] sm:$0xff]
  %58 = xla_tuple %v57
  %59 = xla_tuple %58
  %v60 = vxor.u32 %v57, 2147483648
  %61 = xla_tuple %v60
  %s62 = scalar_lea.vmem %s1, 112
  %63 = vst [vmem:[%s62] sm:$0xff] %v60
  %s64 = scalar_lea.vmem %s0, 8
  %v65 = vld [vmem:[%s64] sm:$0xff]
  %66 = xla_tuple %v65
  %67 = xla_tuple %66
  %v68 = vxor.u32 %v65, 2147483648
  %69 = xla_tuple %v68
  %s70 = scalar_lea.vmem %s1, 8
  %71 = vst [vmem:[%s70] sm:$0xff] %v68
  %s72 = scalar_lea.vmem %s0, 72
  %v73 = vld [vmem:[%s72] sm:$0xff]
  %74 = xla_tuple %v73
  %75 = xla_tuple %74
  %v76 = vxor.u32 %v73, 2147483648
  %77 = xla_tuple %v76
  %s78 = scalar_lea.vmem %s1, 72
  %79 = vst [vmem:[%s78] sm:$0xff] %v76
  %s80 = scalar_lea.vmem %s0, 24
  %v81 = vld [vmem:[%s80] sm:$0xff]
  %82 = xla_tuple %v81
  %83 = xla_tuple %82
  %v84 = vxor.u32 %v81, 2147483648
  %85 = xla_tuple %v84
  %s86 = scalar_lea.vmem %s1, 24
  %87 = vst [vmem:[%s86] sm:$0xff] %v84
  %s88 = scalar_lea.vmem %s0, 88
  %v89 = vld [vmem:[%s88] sm:$0xff]
  %90 = xla_tuple %v89
  %91 = xla_tuple %90
  %v92 = vxor.u32 %v89, 2147483648
  %93 = xla_tuple %v92
  %s94 = scalar_lea.vmem %s1, 88
  %95 = vst [vmem:[%s94] sm:$0xff] %v92
  %s96 = scalar_lea.vmem %s0, 40
  %v97 = vld [vmem:[%s96] sm:$0xff]
  %98 = xla_tuple %v97
  %99 = xla_tuple %98
  %v100 = vxor.u32 %v97, 2147483648
  %101 = xla_tuple %v100
  %s102 = scalar_lea.vmem %s1, 40
  %103 = vst [vmem:[%s102] sm:$0xff] %v100
  %s104 = scalar_lea.vmem %s0, 104
  %v105 = vld [vmem:[%s104] sm:$0xff]
  %106 = xla_tuple %v105
  %107 = xla_tuple %106
  %v108 = vxor.u32 %v105, 2147483648
  %109 = xla_tuple %v108
  %s110 = scalar_lea.vmem %s1, 104
  %111 = vst [vmem:[%s110] sm:$0xff] %v108
  %s112 = scalar_lea.vmem %s0, 56
  %v113 = vld [vmem:[%s112] sm:$0xff]
  %114 = xla_tuple %v113
  %115 = xla_tuple %114
  %v116 = vxor.u32 %v113, 2147483648
  %117 = xla_tuple %v116
  %s118 = scalar_lea.vmem %s1, 56
  %119 = vst [vmem:[%s118] sm:$0xff] %v116
  %s120 = scalar_lea.vmem %s0, 120
  %v121 = vld [vmem:[%s120] sm:$0xff]
  %122 = xla_tuple %v121
  %123 = xla_tuple %122
  %v124 = vxor.u32 %v121, 2147483648
  %125 = xla_tuple %v124
  %s126 = scalar_lea.vmem %s1, 120
  %127 = vst [vmem:[%s126] sm:$0xff] %v124

// kernel: point_head_forward.1
$region0: #{point_head_forward.1}
  #allocation0 [shape = 'u32[]', space=smem, size = 0x4, offset = 0x4, fixed_abs, tag = 'smem constant byte address 0x4 - core index']
  #allocation1 [shape = 'u32[144,128]{1,0:T(1,128)}', space=vmem, size = 0x12000, scoped, tag = 'internal scratch']
  %s0 = inlined_call_operand.vmem [shape: f32[2,4,256], index: 0, kind: input, shape index: {}]
  %s1 = inlined_call_operand.vmem [shape: f32[2,28,256], index: 1, kind: input, shape index: {}]
  %s2 = inlined_call_operand.vmem [shape: s32[2,1,64], index: 2, kind: input, shape index: {}]
  %s3 = inlined_call_operand.vmem [shape: f32[2,4,64], index: 3, kind: input, shape index: {}]
  %s4 = inlined_call_operand.vmem [shape: f32[4,4], index: 4, kind: input, shape index: {}]
  %s5 = inlined_call_operand.vmem [shape: f32[4,28], index: 5, kind: input, shape index: {}]
  %s6 = inlined_call_operand.vmem [shape: f32[4,1], index: 6, kind: input, shape index: {}]
  %s7 = inlined_call_operand.hbm [shape: f32[2,4,64], index: 7, kind: output, shape index: {}]
  %s8 = sld [smem:[#allocation0]]
  $region61: #{point_head_forward.1} parent=0
    _
  %s10 = ssub.s32 1, %s8
  %s11 = scalar_select 0, %s10, %s8
  $region1: #{point_head_forward.1} parent=0
    #allocation2 [shape = 'u8[4096]{0}', space=vmem, size = 0x1000, scoped, tag = 'output window, operand 0']
    #allocation3 [shape = 's32[2]{0}', space=sflag, size = 0x8, scoped, tag = 'scoped memory for point_head_forward.1']
    %12 = vsyncpa [#allocation3], 0
    %s13 = scalar_lea.sflag [#allocation3], 1
    %14 = vsyncpa %s13, 0
    loop: start=0, step=1, limit=4
    $region2: #{point_head_forward.1} parent=1 // loop_pre_header
      _
    $region3: #{point_head_forward.1} parent=1 // loop_header
      %s16 = sphi 0, %s20
      %p17 = scmp.ge.s32.totalorder %s16, 4
      %s26 = sphi 0, %s28
      %s29 = sphi 0, %s26
      %s30 = sphi 0, %s29
      %s46 = sphi 0, %s30
      %s52 = sphi 0, %s54
      %s55 = sphi 0, %s52
      %s56 = sphi 0, %s55
      %s72 = sphi 0, %s56
      %s78 = sphi 0, %s80
      %s81 = sphi 0, %s78
      %s82 = sphi 0, %s81
      %s98 = sphi 0, %s82
      %s104 = sphi 0, %s106
      %s107 = sphi 0, %s104
      %s108 = sphi 0, %s107
      %s124 = sphi 0, %s108
      %s128 = sphi 0, %s128
      %s130 = sphi 0, %s128
      %s131 = sphi 0, %s130
      %s145 = sphi 0, %s131
      %s149 = sphi 0, %s149
      %s151 = sphi 0, %s149
      %s152 = sphi 0, %s151
      %s166 = sphi 0, %s152
      %s170 = sphi 0, %s170
      %s172 = sphi 0, %s170
      %s173 = sphi 0, %s172
      %s187 = sphi 0, %s173
      %s193 = sphi 0, %s195
      %s196 = sphi 0, %s193
      %s197 = sphi 0, %s196
      %s213 = sphi 0, %s197
    $region4: #{point_head_forward.1} parent=1 // loop_header_branch
      %19 = sbr.rel (%p17) target = $region8
    $region5: #{point_head_forward.1} parent=1 // loop_body
      %s21 = ssub.s32 %s16, 1
      %s22 = ssub.s32 %s16, 2
      %s23 = sadd.s32 %s16, 1
      %s24 = ssub.s32 %s16, %s23
      %p25 = scmp.eq.s32.totalorder %s24, 0
      %s27 = sadd.s32 %s26, 1
      %s28 = scalar_select %p25, %s26, %s27
      %p31 = pneg %p25
      %p32 = scmp.eq.s32.totalorder %s16, 1
      %p33 = por %p31, %p32
      %p34 = scmp.ne.s32.totalorder %s26, %s29
      %p35 = scmp.eq.s32.totalorder %s16, 0
      %p36 = por %p34, %p35
      %p37 = scmp.ne.s32.totalorder %s26, %s29
      %p38 = scmp.eq.s32.totalorder %s21, 1
      %p39 = por %p37, %p38
      %p40 = scmp.ne.s32.totalorder %s29, %s30
      %p41 = scmp.eq.s32.totalorder %s21, 0
      %p42 = por %p40, %p41
      %p43 = scmp.ne.s32.totalorder %s29, %s30
      %p44 = scmp.eq.s32.totalorder %s22, 1
      %p45 = por %p43, %p44
      %p47 = scmp.ne.s32.totalorder %s30, %s46
      %p48 = scmp.eq.s32.totalorder %s22, 0
      %p49 = por %p47, %p48
      %s50 = ssub.s32 %s16, %s23
      %p51 = scmp.eq.s32.totalorder %s50, 0
      %s53 = sadd.s32 %s52, 1
      %s54 = scalar_select %p51, %s52, %s53
      %p57 = pneg %p51
      %p58 = scmp.eq.s32.totalorder %s16, 1
      %p59 = por %p57, %p58
      %p60 = scmp.ne.s32.totalorder %s52, %s55
      %p61 = scmp.eq.s32.totalorder %s16, 0
      %p62 = por %p60, %p61
      %p63 = scmp.ne.s32.totalorder %s52, %s55
      %p64 = scmp.eq.s32.totalorder %s21, 1
      %p65 = por %p63, %p64
      %p66 = scmp.ne.s32.totalorder %s55, %s56
      %p67 = scmp.eq.s32.totalorder %s21, 0
      %p68 = por %p66, %p67
      %p69 = scmp.ne.s32.totalorder %s55, %s56
      %p70 = scmp.eq.s32.totalorder %s22, 1
      %p71 = por %p69, %p70
      %p73 = scmp.ne.s32.totalorder %s56, %s72
      %p74 = scmp.eq.s32.totalorder %s22, 0
      %p75 = por %p73, %p74
      %s76 = ssub.s32 %s16, %s23
      %p77 = scmp.eq.s32.totalorder %s76, 0
      %s79 = sadd.s32 %s78, 1
      %s80 = scalar_select %p77, %s78, %s79
      %p83 = pneg %p77
      %p84 = scmp.eq.s32.totalorder %s16, 1
      %p85 = por %p83, %p84
      %p86 = scmp.ne.s32.totalorder %s78, %s81
      %p87 = scmp.eq.s32.totalorder %s16, 0
      %p88 = por %p86, %p87
      %p89 = scmp.ne.s32.totalorder %s78, %s81
      %p90 = scmp.eq.s32.totalorder %s21, 1
      %p91 = por %p89, %p90
      %p92 = scmp.ne.s32.totalorder %s81, %s82
      %p93 = scmp.eq.s32.totalorder %s21, 0
      %p94 = por %p92, %p93
      %p95 = scmp.ne.s32.totalorder %s81, %s82
      %p96 = scmp.eq.s32.totalorder %s22, 1
      %p97 = por %p95, %p96
      %p99 = scmp.ne.s32.totalorder %s82, %s98
      %p100 = scmp.eq.s32.totalorder %s22, 0
      %p101 = por %p99, %p100
      %s102 = ssub.s32 %s16, %s23
      %p103 = scmp.eq.s32.totalorder %s102, 0
      %s105 = sadd.s32 %s104, 1
      %s106 = scalar_select %p103, %s104, %s105
      %p109 = pneg %p103
      %p110 = scmp.eq.s32.totalorder %s16, 1
      %p111 = por %p109, %p110
      %p112 = scmp.ne.s32.totalorder %s104, %s107
      %p113 = scmp.eq.s32.totalorder %s16, 0
      %p114 = por %p112, %p113
      %p115 = scmp.ne.s32.totalorder %s104, %s107
      %p116 = scmp.eq.s32.totalorder %s21, 1
      %p117 = por %p115, %p116
      %p118 = scmp.ne.s32.totalorder %s107, %s108
      %p119 = scmp.eq.s32.totalorder %s21, 0
      %p120 = por %p118, %p119
      %p121 = scmp.ne.s32.totalorder %s107, %s108
      %p122 = scmp.eq.s32.totalorder %s22, 1
      %p123 = por %p121, %p122
      %p125 = scmp.ne.s32.totalorder %s108, %s124
      %p126 = scmp.eq.s32.totalorder %s22, 0
      %p127 = por %p125, %p126
      %s129 = sadd.s32 %s128, 1
      %p132 = scmp.eq.s32.totalorder %s16, 1
      %p133 = scmp.ne.s32.totalorder %s128, %s130
      %p134 = scmp.eq.s32.totalorder %s16, 0
      %p135 = por %p133, %p134
      %p136 = scmp.ne.s32.totalorder %s128, %s130
      %p137 = scmp.eq.s32.totalorder %s21, 1
      %p138 = por %p136, %p137
      %p139 = scmp.ne.s32.totalorder %s130, %s131
      %p140 = scmp.eq.s32.totalorder %s21, 0
      %p141 = por %p139, %p140
      %p142 = scmp.ne.s32.totalorder %s130, %s131
      %p143 = scmp.eq.s32.totalorder %s22, 1
      %p144 = por %p142, %p143
      %p146 = scmp.ne.s32.totalorder %s131, %s145
      %p147 = scmp.eq.s32.totalorder %s22, 0
      %p148 = por %p146, %p147
      %s150 = sadd.s32 %s149, 1
      %p153 = scmp.eq.s32.totalorder %s16, 1
      %p154 = scmp.ne.s32.totalorder %s149, %s151
      %p155 = scmp.eq.s32.totalorder %s16, 0
      %p156 = por %p154, %p155
      %p157 = scmp.ne.s32.totalorder %s149, %s151
      %p158 = scmp.eq.s32.totalorder %s21, 1
      %p159 = por %p157, %p158
      %p160 = scmp.ne.s32.totalorder %s151, %s152
      %p161 = scmp.eq.s32.totalorder %s21, 0
      %p162 = por %p160, %p161
      %p163 = scmp.ne.s32.totalorder %s151, %s152
      %p164 = scmp.eq.s32.totalorder %s22, 1
      %p165 = por %p163, %p164
      %p167 = scmp.ne.s32.totalorder %s152, %s166
      %p168 = scmp.eq.s32.totalorder %s22, 0
      %p169 = por %p167, %p168
      %s171 = sadd.s32 %s170, 1
      %p174 = scmp.eq.s32.totalorder %s16, 1
      %p175 = scmp.ne.s32.totalorder %s170, %s172
      %p176 = scmp.eq.s32.totalorder %s16, 0
      %p177 = por %p175, %p176
      %p178 = scmp.ne.s32.totalorder %s170, %s172
      %p179 = scmp.eq.s32.totalorder %s21, 1
      %p180 = por %p178, %p179
      %p181 = scmp.ne.s32.totalorder %s172, %s173
      %p182 = scmp.eq.s32.totalorder %s21, 0
      %p183 = por %p181, %p182
      %p184 = scmp.ne.s32.totalorder %s172, %s173
      %p185 = scmp.eq.s32.totalorder %s22, 1
      %p186 = por %p184, %p185
      %p188 = scmp.ne.s32.totalorder %s173, %s187
      %p189 = scmp.eq.s32.totalorder %s22, 0
      %p190 = por %p188, %p189
      %s191 = ssub.s32 %s16, %s23
      %p192 = scmp.eq.s32.totalorder %s191, 0
      %s194 = sadd.s32 %s193, 1
      %s195 = scalar_select %p192, %s193, %s194
      %p198 = pneg %p192
      %p199 = scmp.eq.s32.totalorder %s16, 1
      %p200 = por %p198, %p199
      %p201 = scmp.ne.s32.totalorder %s193, %s196
      %p202 = scmp.eq.s32.totalorder %s16, 0
      %p203 = por %p201, %p202
      %p204 = scmp.ne.s32.totalorder %s193, %s196
      %p205 = scmp.eq.s32.totalorder %s21, 1
      %p206 = por %p204, %p205
      %p207 = scmp.ne.s32.totalorder %s196, %s197
      %p208 = scmp.eq.s32.totalorder %s21, 0
      %p209 = por %p207, %p208
      %p210 = scmp.ne.s32.totalorder %s196, %s197
      %p211 = scmp.eq.s32.totalorder %s22, 1
      %p212 = por %p210, %p211
      %p214 = scmp.ne.s32.totalorder %s197, %s213
      %p215 = scmp.eq.s32.totalorder %s22, 0
      %p216 = por %p214, %p215
      %p217 = scmp.le.s32.totalorder 1, %s16
      %p218 = scmp.lt.s32.totalorder %s16, 3
      %p219 = pnand %p217, %p218
      %p220 = pneg %p219
      // Predicated region
      $region9: #{point_head_forward.1} parent=5 // pred_check
        _
      $region10: #{point_head_forward.1} parent=5 // pred_check_branch
        %222 = sbr.rel (%p219) target = $region12
      $region11: #{point_head_forward.1} parent=5 // pred_region
        %s223 = ssub.s32 %s16, 1
        // Predicated region
        $region13: #{point_head_forward.1} parent=11 // pred_check
          %p224 = pneg %p141
        $region14: #{point_head_forward.1} parent=11 // pred_check_branch
          %226 = sbr.rel (%p224) target = $region16
        $region15: #{point_head_forward.1} parent=11 // pred_region
          _
        $region16: #{point_head_forward.1} parent=11 // pred_fallthru
          _
        // Predicated region
        $region17: #{point_head_forward.1} parent=11 // pred_check
          %p227 = pneg %p162
        $region18: #{point_head_forward.1} parent=11 // pred_check_branch
          %229 = sbr.rel (%p227) target = $region20
        $region19: #{point_head_forward.1} parent=11 // pred_region
          _
        $region20: #{point_head_forward.1} parent=11 // pred_fallthru
          _
        // Predicated region
        $region21: #{point_head_forward.1} parent=11 // pred_check
          %p230 = pneg %p183
        $region22: #{point_head_forward.1} parent=11 // pred_check_branch
          %232 = sbr.rel (%p230) target = $region24
        $region23: #{point_head_forward.1} parent=11 // pred_region
          _
        $region24: #{point_head_forward.1} parent=11 // pred_fallthru
          _
      $region12: #{point_head_forward.1} parent=5 // pred_fallthru
        _
      %p233 = scmp.lt.s32.totalorder %s16, 2
      // Predicated region
      $region25: #{point_head_forward.1} parent=5 // pred_check
        %p234 = pneg %p233
      $region26: #{point_head_forward.1} parent=5 // pred_check_branch
        %236 = sbr.rel (%p234) target = $region28
      $region27: #{point_head_forward.1} parent=5 // pred_region
        // Predicated region
        $region29: #{point_head_forward.1} parent=27 // pred_check
          %p237 = pneg %p36
        $region30: #{point_head_forward.1} parent=27 // pred_check_branch
          %239 = sbr.rel (%p237) target = $region32
        $region31: #{point_head_forward.1} parent=27 // pred_region
          %p240 = scmp.lt.s32.totalorder %s16, 1
          %s241 = scalar_select %p240, %s16, 1
          %s242 = smul.addr %s241, 2
          %s243 = smul.addr %s242, 4
          %s244 = scalar_lea.vmem %s0, %s243
        $region32: #{point_head_forward.1} parent=27 // pred_fallthru
          _
        // Predicated region
        $region33: #{point_head_forward.1} parent=27 // pred_check
          %p245 = pneg %p62
        $region34: #{point_head_forward.1} parent=27 // pred_check_branch
          %247 = sbr.rel (%p245) target = $region36
        $region35: #{point_head_forward.1} parent=27 // pred_region
          %p248 = scmp.lt.s32.totalorder %s16, 1
          %s249 = scalar_select %p248, %s16, 1
          %s250 = smul.addr %s249, 8
          %s251 = smul.addr %s250, 8
          %s252 = scalar_lea.vmem %s1, %s251
        $region36: #{point_head_forward.1} parent=27 // pred_fallthru
          _
        // Predicated region
        $region37: #{point_head_forward.1} parent=27 // pred_check
          %p253 = pneg %p88
        $region38: #{point_head_forward.1} parent=27 // pred_check_branch
          %255 = sbr.rel (%p253) target = $region40
        $region39: #{point_head_forward.1} parent=27 // pred_region
          %p256 = scmp.lt.s32.totalorder %s16, 1
          %s257 = scalar_select %p256, %s16, 1
          %s258 = scalar_lea.vmem %s2, %s257
        $region40: #{point_head_forward.1} parent=27 // pred_fallthru
          _
        // Predicated region
        $region41: #{point_head_forward.1} parent=27 // pred_check
          %p259 = pneg %p114
        $region42: #{point_head_forward.1} parent=27 // pred_check_branch
          %261 = sbr.rel (%p259) target = $region44
        $region43: #{point_head_forward.1} parent=27 // pred_region
          %p262 = scmp.lt.s32.totalorder %s16, 1
          %s263 = scalar_select %p262, %s16, 1
          %s264 = smul.addr %s263, 4
          %s265 = scalar_lea.vmem %s3, %s264
        $region44: #{point_head_forward.1} parent=27 // pred_fallthru
          _
      $region28: #{point_head_forward.1} parent=5 // pred_fallthru
        _
      %p266 = scmp.le.s32.totalorder 1, %s16
      %p267 = scmp.lt.s32.totalorder %s16, 3
      %p268 = pnand %p266, %p267
      %p269 = pneg %p268
      // Predicated region
      $region45: #{point_head_forward.1} parent=5 // pred_check
        _
      $region46: #{point_head_forward.1} parent=5 // pred_check_branch
        %271 = sbr.rel (%p268) target = $region48
      $region47: #{point_head_forward.1} parent=5 // pred_region
        %s272 = ssub.s32 %s16, 1
        %p273 = scmp.lt.s32.totalorder %s21, 1
        %s274 = scalar_select %p273, %s21, 1
        %s275 = smul.addr %s274, 2
        %s276 = smul.addr %s275, 4
        %s277 = scalar_lea.vmem %s0, %s276
        %p278 = pneg %p42
        %p279 = pneg %p39
        %p280 = scmp.lt.s32.totalorder %s21, 1
        %s281 = scalar_select %p280, %s21, 1
        %s282 = smul.addr %s281, 8
        %s283 = smul.addr %s282, 8
        %s284 = scalar_lea.vmem %s1, %s283
        %p285 = pneg %p68
        %p286 = pneg %p65
        %p287 = scmp.lt.s32.totalorder %s21, 1
        %s288 = scalar_select %p287, %s21, 1
        %s289 = scalar_lea.vmem %s2, %s288
        %p290 = pneg %p94
        %p291 = pneg %p91
        %p292 = scmp.lt.s32.totalorder %s21, 1
        %s293 = scalar_select %p292, %s21, 1
        %s294 = smul.addr %s293, 4
        %s295 = scalar_lea.vmem %s3, %s294
        %p296 = pneg %p120
        %p297 = pneg %p117
        %p298 = pneg %p141
        %p299 = pneg %p138
        %p300 = pneg %p162
        %p301 = pneg %p159
        %p302 = pneg %p183
        %p303 = pneg %p180
        %p304 = pneg %p209
        %p305 = pneg %p206
        %s306 = sand.u32 %s196, 1
        %s307 = scalar_lea.sflag [#allocation3], %s306
        %s308 = sand.u32 %s196, 1
        %s309 = smul.addr %s308, 4
        %s310 = scalar_lea.vmem [#allocation2], %s309
        %p311 = scmp.lt.s32.totalorder %s21, 1
        %s312 = scalar_select %p311, %s21, 1
        %s313 = smul.addr %s312, 2
        %s314 = smul.addr %s313, 4
        %s315 = scalar_lea.vmem %s0, %s314
        %p316 = scmp.lt.s32.totalorder %s21, 1
        %s317 = scalar_select %p316, %s21, 1
        %s318 = smul.addr %s317, 8
        %s319 = smul.addr %s318, 8
        %s320 = scalar_lea.vmem %s1, %s319
        %p321 = scmp.lt.s32.totalorder %s21, 1
        %s322 = scalar_select %p321, %s21, 1
        %s323 = scalar_lea.vmem %s2, %s322
        %p324 = scmp.lt.s32.totalorder %s21, 1
        %s325 = scalar_select %p324, %s21, 1
        %s326 = smul.addr %s325, 4
        %s327 = scalar_lea.vmem %s3, %s326
        %v328 = vld [vmem:[%s4] sm:$0xf]
        %v329 = vld [vmem:[%s315] sm:$0xff]
        %v330 = vld [vmem:[%s5] sm:$0xf]
        %v331 = vld [vmem:[%s320] sm:$0xff]
        %v332 = vld [vmem:[%s320 + $0x8] sm:$0xff]
        %v333 = vld [vmem:[%s320 + $0x10] sm:$0xff]
        %v334 = vld [vmem:[%s320 + $0x18] sm:$0xff]
        %v335 = vld [vmem:[%s320 + $0x20] sm:$0xff]
        %v336 = vld [vmem:[%s320 + $0x28] sm:$0xff]
        %v337 = vld [vmem:[%s320 + $0x30] sm:$0xf]
        %v338 = vld [vmem:[%s320 + $0x38] sm:$0xf]
        %vm339 = vcmask 228352
        %v341 = vsel %vm339, %v330, 0
        %vm343 = vcmask 1043456
        %v345 = vsel %vm343, %v337, 0
        %v348 = vsel %vm343, %v338, 0
        %350 = vmatprep.subr.mxu0 %v332
        %351 = vmatpush1.msra.mxu0 %v331
        %352 = vmatprep.subr.mxu0 %v334
        %353 = vmatpush1.msra.mxu0 %v333
        %354 = vmatprep.subr.mxu0 %v336
        %355 = vmatpush1.msra.mxu0 %v335
        %356 = vmatprep.subr.mxu0 %v348
        %357 = vmatpush1.msra.mxu0 %v345
        %358 = vmatprep.subr.mxu0 0.0
        %359 = vmatpush1.msra.mxu0 0.0
        %360 = vmatprep.subr.mxu0 0.0
        %361 = vmatpush1.msra.mxu0 0.0
        %362 = vmatprep.subr.mxu0 0.0
        %363 = vmatpush1.msra.mxu0 0.0
        %364 = vmatprep.subr.mxu0 0.0
        %365 = vmatpush1.msra.mxu0 0.0
        %366 = vmatprep.subr.mxu0 0.0
        %367 = vmatpush1.msra.mxu0 0.0
        %368 = vmatprep.subr.mxu0 0.0
        %369 = vmatpush1.msra.mxu0 0.0
        %370 = vmatprep.subr.mxu0 0.0
        %371 = vmatpush1.msra.mxu0 0.0
        %372 = vmatprep.subr.mxu0 0.0
        %373 = vmatpush1.msra.mxu0 0.0
        %374 = vmatprep.subr.mxu0 0.0
        %375 = vmatpush1.msra.mxu0 0.0
        %376 = vmatprep.subr.mxu0 0.0
        %377 = vmatpush1.msra.mxu0 0.0
        %378 = vmatprep.subr.mxu0 0.0
        %379 = vmatpush1.msra.mxu0 0.0
        %380 = vmatprep.subr.mxu0 0.0
        %381 = vmatpush1.msra.mxu0 0.0
        %382 = vmatprep.subr.mxu0 0.0
        %383 = vmatpush1.msra.mxu0 0.0
        %384 = vmatprep.subr.mxu0 0.0
        %385 = vmatpush1.msra.mxu0 0.0
        %386 = vmatprep.subr.mxu0 0.0
        %387 = vmatpush1.msra.mxu0 0.0
        %388 = vmatprep.subr.mxu0 0.0
        %389 = vmatpush1.msra.mxu0 0.0
        %390 = vmatprep.subr.mxu0 0.0
        %391 = vmatpush1.msra.mxu0 0.0
        %392 = vmatprep.subr.mxu0 0.0
        %393 = vmatpush1.msra.mxu0 0.0
        %394 = vmatprep.subr.mxu0 0.0
        %395 = vmatpush1.msra.mxu0 0.0
        %396 = vmatprep.subr.mxu0 0.0
        %397 = vmatpush1.msra.mxu0 0.0
        %398 = vmatprep.subr.mxu0 0.0
        %399 = vmatpush1.msra.mxu0 0.0
        %400 = vmatprep.subr.mxu0 0.0
        %401 = vmatpush1.msra.mxu0 0.0
        %402 = vmatprep.subr.mxu0 0.0
        %403 = vmatpush1.msra.mxu0 0.0
        %404 = vmatprep.subr.mxu0 0.0
        %405 = vmatpush1.msra.mxu0 0.0
        %406 = vmatprep.subr.mxu0 0.0
        %407 = vmatpush1.msra.mxu0 0.0
        %408 = vmatprep.subr.mxu0 0.0
        %409 = vmatpush1.msra.mxu0 0.0
        %410 = vmatprep.subr.mxu0 0.0
        %411 = vmatpush1.msra.mxu0 0.0
        %412 = vmatprep.subr.mxu0 0.0
        %413 = vmatpush1.msra.mxu0 0.0
        %414 = vmatprep.mubr.f32.mxu0 0.0
        %415 = vmatmul.mubr.f32.gmra.mrb[0].mxu0 %v341
        %v416 = vpop.f32.mrb[0].mxu0
        %v417 = vadd.f32 0.0, %v416
        %v418 = vpop.f32.mrb[0].mxu0
        %v419 = vadd.f32 0.0, %v418
        %420 = vdwg.mxu0
        %v422 = vcombine.high %v329, %v329
        %vm423 = vcmask 31744
        %v425 = vsel %vm423, %v328, 0
        %v427 = vsel %vm343, %v329, 0
        %v429 = vsel %vm343, %v422, 0
        %431 = vmatprep.subr.mxu0 %v429
        %432 = vmatpush1.msra.mxu0 %v427
        %433 = vmatprep.subr.mxu0 0.0
        %434 = vmatpush1.msra.mxu0 0.0
        %435 = vmatprep.subr.mxu0 0.0
        %436 = vmatpush1.msra.mxu0 0.0
        %437 = vmatprep.subr.mxu0 0.0
        %438 = vmatpush1.msra.mxu0 0.0
        %439 = vmatprep.subr.mxu0 0.0
        %440 = vmatpush1.msra.mxu0 0.0
        %441 = vmatprep.subr.mxu0 0.0
        %442 = vmatpush1.msra.mxu0 0.0
        %443 = vmatprep.subr.mxu0 0.0
        %444 = vmatpush1.msra.mxu0 0.0
        %445 = vmatprep.subr.mxu0 0.0
        %446 = vmatpush1.msra.mxu0 0.0
        %447 = vmatprep.subr.mxu0 0.0
        %448 = vmatpush1.msra.mxu0 0.0
        %449 = vmatprep.subr.mxu0 0.0
        %450 = vmatpush1.msra.mxu0 0.0
        %451 = vmatprep.subr.mxu0 0.0
        %452 = vmatpush1.msra.mxu0 0.0
        %453 = vmatprep.subr.mxu0 0.0
        %454 = vmatpush1.msra.mxu0 0.0
        %455 = vmatprep.subr.mxu0 0.0
        %456 = vmatpush1.msra.mxu0 0.0
        %457 = vmatprep.subr.mxu0 0.0
        %458 = vmatpush1.msra.mxu0 0.0
        %459 = vmatprep.subr.mxu0 0.0
        %460 = vmatpush1.msra.mxu0 0.0
        %461 = vmatprep.subr.mxu0 0.0
        %462 = vmatpush1.msra.mxu0 0.0
        %463 = vmatprep.subr.mxu0 0.0
        %464 = vmatpush1.msra.mxu0 0.0
        %465 = vmatprep.subr.mxu0 0.0
        %466 = vmatpush1.msra.mxu0 0.0
        %467 = vmatprep.subr.mxu0 0.0
        %468 = vmatpush1.msra.mxu0 0.0
        %469 = vmatprep.subr.mxu0 0.0
        %470 = vmatpush1.msra.mxu0 0.0
        %471 = vmatprep.subr.mxu0 0.0
        %472 = vmatpush1.msra.mxu0 0.0
        %473 = vmatprep.subr.mxu0 0.0
        %474 = vmatpush1.msra.mxu0 0.0
        %475 = vmatprep.subr.mxu0 0.0
        %476 = vmatpush1.msra.mxu0 0.0
        %477 = vmatprep.subr.mxu0 0.0
        %478 = vmatpush1.msra.mxu0 0.0
        %479 = vmatprep.subr.mxu0 0.0
        %480 = vmatpush1.msra.mxu0 0.0
        %481 = vmatprep.subr.mxu0 0.0
        %482 = vmatpush1.msra.mxu0 0.0
        %483 = vmatprep.subr.mxu0 0.0
        %484 = vmatpush1.msra.mxu0 0.0
        %485 = vmatprep.subr.mxu0 0.0
        %486 = vmatpush1.msra.mxu0 0.0
        %487 = vmatprep.subr.mxu0 0.0
        %488 = vmatpush1.msra.mxu0 0.0
        %489 = vmatprep.subr.mxu0 0.0
        %490 = vmatpush1.msra.mxu0 0.0
        %491 = vmatprep.subr.mxu0 0.0
        %492 = vmatpush1.msra.mxu0 0.0
        %493 = vmatprep.subr.mxu0 0.0
        %494 = vmatpush1.msra.mxu0 0.0
        %495 = vmatprep.mubr.f32.mxu0 0.0
        %496 = vmatmul.mubr.f32.gmra.mrb[0].mxu0 %v425
        %v497 = vpop.f32.mrb[0].mxu0
        %v498 = vadd.f32 %v417, %v497
        %v499 = vpop.f32.mrb[0].mxu0
        %v500 = vadd.f32 %v419, %v499
        %501 = vdwg.mxu0
        %v502 = vlaneseq
        %v503 = vshrl.u32 %v502, 7
        %v504 = vadd.s32 %v503, 8
        %v505 = vadd.s32 %v503, 16
        %v506 = vadd.s32 %v503, 24
        %v507 = vadd.s32 %v503, 32
        %v508 = vadd.s32 %v503, 40
        %v509 = vadd.s32 %v503, 48
        %v510 = vadd.s32 %v503, 56
        %v511 = vadd.s32 %v503, 64
        %v512 = vadd.s32 %v503, 72
        %v513 = vadd.s32 %v503, 80
        %v514 = vadd.s32 %v503, 88
        %v515 = vadd.s32 %v503, 96
        %v516 = vadd.s32 %v503, 104
        %v517 = vadd.s32 %v503, 112
        %v518 = vadd.s32 %v503, 120
        %v519 = vadd.s32 %v503, 128
        %v520 = vadd.s32 %v503, 136
        %v521 = vadd.s32 %v503, 144
        %v522 = vadd.s32 %v503, 152
        %v523 = vadd.s32 %v503, 160
        %v524 = vadd.s32 %v503, 168
        %v525 = vadd.s32 %v503, 176
        %v526 = vadd.s32 %v503, 184
        %v527 = vadd.s32 %v503, 192
        %v528 = vadd.s32 %v503, 200
        %v529 = vadd.s32 %v503, 208
        %v530 = vadd.s32 %v503, 216
        %v531 = vadd.s32 %v503, 224
        %v532 = vadd.s32 %v503, 232
        %v533 = vadd.s32 %v503, 240
        %v534 = vadd.s32 %v503, 248
        %v535 = vld [vmem:[%s323] sm:$0x1]
        %v536 = vlaneseq
        %v537 = vshrl.u32 %v536, 7
        %v538 = vsub.s32 0, %v537
        %v539 = vrot.slane %v535, %v538
        %v540 = vsub.s32 %v503, %v539
        %v541 = vsub.s32 %v504, %v539
        %v542 = vsub.s32 %v505, %v539
        %v543 = vsub.s32 %v506, %v539
        %v544 = vsub.s32 %v507, %v539
        %v545 = vsub.s32 %v508, %v539
        %v546 = vsub.s32 %v509, %v539
        %v547 = vsub.s32 %v510, %v539
        %v548 = vsub.s32 %v511, %v539
        %v549 = vsub.s32 %v512, %v539
        %v550 = vsub.s32 %v513, %v539
        %v551 = vsub.s32 %v514, %v539
        %v552 = vsub.s32 %v515, %v539
        %v553 = vsub.s32 %v516, %v539
        %v554 = vsub.s32 %v517, %v539
        %v555 = vsub.s32 %v518, %v539
        %v556 = vsub.s32 %v519, %v539
        %v557 = vsub.s32 %v520, %v539
        %v558 = vsub.s32 %v521, %v539
        %v559 = vsub.s32 %v522, %v539
        %v560 = vsub.s32 %v523, %v539
        %v561 = vsub.s32 %v524, %v539
        %v562 = vsub.s32 %v525, %v539
        %v563 = vsub.s32 %v526, %v539
        %v564 = vsub.s32 %v527, %v539
        %v565 = vsub.s32 %v528, %v539
        %v566 = vsub.s32 %v529, %v539
        %v567 = vsub.s32 %v530, %v539
        %v568 = vsub.s32 %v531, %v539
        %v569 = vsub.s32 %v532, %v539
        %v570 = vsub.s32 %v533, %v539
        %v571 = vsub.s32 %v534, %v539
        %v572 = vld [vmem:[%s327] sm:$0xf]
        %vm573 = vcmp.eq.s32.totalorder %v540, 0
        %vm574 = vcmp.eq.s32.totalorder %v541, 0
        %vm575 = vcmp.eq.s32.totalorder %v542, 0
        %vm576 = vcmp.eq.s32.totalorder %v543, 0
        %vm577 = vcmp.eq.s32.totalorder %v544, 0
        %vm578 = vcmp.eq.s32.totalorder %v545, 0
        %vm579 = vcmp.eq.s32.totalorder %v546, 0
        %vm580 = vcmp.eq.s32.totalorder %v547, 0
        %vm581 = vcmp.eq.s32.totalorder %v548, 0
        %vm582 = vcmp.eq.s32.totalorder %v549, 0
        %vm583 = vcmp.eq.s32.totalorder %v550, 0
        %vm584 = vcmp.eq.s32.totalorder %v551, 0
        %vm585 = vcmp.eq.s32.totalorder %v552, 0
        %vm586 = vcmp.eq.s32.totalorder %v553, 0
        %vm587 = vcmp.eq.s32.totalorder %v554, 0
        %vm588 = vcmp.eq.s32.totalorder %v555, 0
        %vm589 = vcmp.eq.s32.totalorder %v556, 0
        %vm590 = vcmp.eq.s32.totalorder %v557, 0
        %vm591 = vcmp.eq.s32.totalorder %v558, 0
        %vm592 = vcmp.eq.s32.totalorder %v559, 0
        %vm593 = vcmp.eq.s32.totalorder %v560, 0
        %vm594 = vcmp.eq.s32.totalorder %v561, 0
        %vm595 = vcmp.eq.s32.totalorder %v562, 0
        %vm596 = vcmp.eq.s32.totalorder %v563, 0
        %vm597 = vcmp.eq.s32.totalorder %v564, 0
        %vm598 = vcmp.eq.s32.totalorder %v565, 0
        %vm599 = vcmp.eq.s32.totalorder %v566, 0
        %vm600 = vcmp.eq.s32.totalorder %v567, 0
        %vm601 = vcmp.eq.s32.totalorder %v568, 0
        %vm602 = vcmp.eq.s32.totalorder %v569, 0
        %vm603 = vcmp.eq.s32.totalorder %v570, 0
        %vm604 = vcmp.eq.s32.totalorder %v571, 0
        %v605 = vlaneseq
        %v606 = vshrl.u32 %v605, 7
        %v607 = vsub.s32 0, %v606
        %v608 = vrot.slane %v572, %v607
        %v609 = vsel %vm573, %v608, 0.0
        %v610 = vsel %vm574, %v608, 0.0
        %v611 = vsel %vm575, %v608, 0.0
        %v612 = vsel %vm576, %v608, 0.0
        %v613 = vsel %vm577, %v608, 0.0
        %v614 = vsel %vm578, %v608, 0.0
        %v615 = vsel %vm579, %v608, 0.0
        %v616 = vsel %vm580, %v608, 0.0
        %v617 = vsel %vm581, %v608, 0.0
        %v618 = vsel %vm582, %v608, 0.0
        %v619 = vsel %vm583, %v608, 0.0
        %v620 = vsel %vm584, %v608, 0.0
        %v621 = vsel %vm585, %v608, 0.0
        %v622 = vsel %vm586, %v608, 0.0
        %v623 = vsel %vm587, %v608, 0.0
        %v624 = vsel %vm588, %v608, 0.0
        %v625 = vsel %vm589, %v608, 0.0
        %v626 = vsel %vm590, %v608, 0.0
        %v627 = vsel %vm591, %v608, 0.0
        %v628 = vsel %vm592, %v608, 0.0
        %v629 = vsel %vm593, %v608, 0.0
        %v630 = vsel %vm594, %v608, 0.0
        %v631 = vsel %vm595, %v608, 0.0
        %v632 = vsel %vm596, %v608, 0.0
        %v633 = vsel %vm597, %v608, 0.0
        %v634 = vsel %vm598, %v608, 0.0
        %v635 = vsel %vm599, %v608, 0.0
        %v636 = vsel %vm600, %v608, 0.0
        %v637 = vsel %vm601, %v608, 0.0
        %v638 = vsel %vm602, %v608, 0.0
        %v639 = vsel %vm603, %v608, 0.0
        %v640 = vsel %vm604, %v608, 0.0
        %vm641 = vcmp.eq.s32.totalorder %v540, 1
        %vm642 = vcmp.eq.s32.totalorder %v541, 1
        %vm643 = vcmp.eq.s32.totalorder %v542, 1
        %vm644 = vcmp.eq.s32.totalorder %v543, 1
        %vm645 = vcmp.eq.s32.totalorder %v544, 1
        %vm646 = vcmp.eq.s32.totalorder %v545, 1
        %vm647 = vcmp.eq.s32.totalorder %v546, 1
        %vm648 = vcmp.eq.s32.totalorder %v547, 1
        %vm649 = vcmp.eq.s32.totalorder %v548, 1
        %vm650 = vcmp.eq.s32.totalorder %v549, 1
        %vm651 = vcmp.eq.s32.totalorder %v550, 1
        %vm652 = vcmp.eq.s32.totalorder %v551, 1
        %vm653 = vcmp.eq.s32.totalorder %v552, 1
        %vm654 = vcmp.eq.s32.totalorder %v553, 1
        %vm655 = vcmp.eq.s32.totalorder %v554, 1
        %vm656 = vcmp.eq.s32.totalorder %v555, 1
        %vm657 = vcmp.eq.s32.totalorder %v556, 1
        %vm658 = vcmp.eq.s32.totalorder %v557, 1
        %vm659 = vcmp.eq.s32.totalorder %v558, 1
        %vm660 = vcmp.eq.s32.totalorder %v559, 1
        %vm661 = vcmp.eq.s32.totalorder %v560, 1
        %vm662 = vcmp.eq.s32.totalorder %v561, 1
        %vm663 = vcmp.eq.s32.totalorder %v562, 1
        %vm664 = vcmp.eq.s32.totalorder %v563, 1
        %vm665 = vcmp.eq.s32.totalorder %v564, 1
        %vm666 = vcmp.eq.s32.totalorder %v565, 1
        %vm667 = vcmp.eq.s32.totalorder %v566, 1
        %vm668 = vcmp.eq.s32.totalorder %v567, 1
        %vm669 = vcmp.eq.s32.totalorder %v568, 1
        %vm670 = vcmp.eq.s32.totalorder %v569, 1
        %vm671 = vcmp.eq.s32.totalorder %v570, 1
        %vm672 = vcmp.eq.s32.totalorder %v571, 1
        %v673 = vlaneseq
        %v674 = vshrl.u32 %v673, 7
        %v675 = vsub.s32 1, %v674
        %v676 = vrot.slane %v572, %v675
        %v677 = vsel %vm641, %v676, %v609
        %v678 = vsel %vm642, %v676, %v610
        %v679 = vsel %vm643, %v676, %v611
        %v680 = vsel %vm644, %v676, %v612
        %v681 = vsel %vm645, %v676, %v613
        %v682 = vsel %vm646, %v676, %v614
        %v683 = vsel %vm647, %v676, %v615
        %v684 = vsel %vm648, %v676, %v616
        %v685 = vsel %vm649, %v676, %v617
        %v686 = vsel %vm650, %v676, %v618
        %v687 = vsel %vm651, %v676, %v619
        %v688 = vsel %vm652, %v676, %v620
        %v689 = vsel %vm653, %v676, %v621
        %v690 = vsel %vm654, %v676, %v622
        %v691 = vsel %vm655, %v676, %v623
        %v692 = vsel %vm656, %v676, %v624
        %v693 = vsel %vm657, %v676, %v625
        %v694 = vsel %vm658, %v676, %v626
        %v695 = vsel %vm659, %v676, %v627
        %v696 = vsel %vm660, %v676, %v628
        %v697 = vsel %vm661, %v676, %v629
        %v698 = vsel %vm662, %v676, %v630
        %v699 = vsel %vm663, %v676, %v631
        %v700 = vsel %vm664, %v676, %v632
        %v701 = vsel %vm665, %v676, %v633
        %v702 = vsel %vm666, %v676, %v634
        %v703 = vsel %vm667, %v676, %v635
        %v704 = vsel %vm668, %v676, %v636
        %v705 = vsel %vm669, %v676, %v637
        %v706 = vsel %vm670, %v676, %v638
        %v707 = vsel %vm671, %v676, %v639
        %v708 = vsel %vm672, %v676, %v640
        %vm709 = vcmp.eq.s32.totalorder %v540, 16
        %vm710 = vcmp.eq.s32.totalorder %v541, 16
        %vm711 = vcmp.eq.s32.totalorder %v542, 16
        %vm712 = vcmp.eq.s32.totalorder %v543, 16
        %vm713 = vcmp.eq.s32.totalorder %v544, 16
        %vm714 = vcmp.eq.s32.totalorder %v545, 16
        %vm715 = vcmp.eq.s32.totalorder %v546, 16
        %vm716 = vcmp.eq.s32.totalorder %v547, 16
        %vm717 = vcmp.eq.s32.totalorder %v548, 16
        %vm718 = vcmp.eq.s32.totalorder %v549, 16
        %vm719 = vcmp.eq.s32.totalorder %v550, 16
        %vm720 = vcmp.eq.s32.totalorder %v551, 16
        %vm721 = vcmp.eq.s32.totalorder %v552, 16
        %vm722 = vcmp.eq.s32.totalorder %v553, 16
        %vm723 = vcmp.eq.s32.totalorder %v554, 16
        %vm724 = vcmp.eq.s32.totalorder %v555, 16
        %vm725 = vcmp.eq.s32.totalorder %v556, 16
        %vm726 = vcmp.eq.s32.totalorder %v557, 16
        %vm727 = vcmp.eq.s32.totalorder %v558, 16
        %vm728 = vcmp.eq.s32.totalorder %v559, 16
        %vm729 = vcmp.eq.s32.totalorder %v560, 16
        %vm730 = vcmp.eq.s32.totalorder %v561, 16
        %vm731 = vcmp.eq.s32.totalorder %v562, 16
        %vm732 = vcmp.eq.s32.totalorder %v563, 16
        %vm733 = vcmp.eq.s32.totalorder %v564, 16
        %vm734 = vcmp.eq.s32.totalorder %v565, 16
        %vm735 = vcmp.eq.s32.totalorder %v566, 16
        %vm736 = vcmp.eq.s32.totalorder %v567, 16
        %vm737 = vcmp.eq.s32.totalorder %v568, 16
        %vm738 = vcmp.eq.s32.totalorder %v569, 16
        %vm739 = vcmp.eq.s32.totalorder %v570, 16
        %vm740 = vcmp.eq.s32.totalorder %v571, 16
        %v741 = vlaneseq
        %v742 = vshrl.u32 %v741, 7
        %v743 = vsub.s32 2, %v742
        %v744 = vrot.slane %v572, %v743
        %v745 = vsel %vm709, %v744, %v677
        %v746 = vsel %vm710, %v744, %v678
        %v747 = vsel %vm711, %v744, %v679
        %v748 = vsel %vm712, %v744, %v680
        %v749 = vsel %vm713, %v744, %v681
        %v750 = vsel %vm714, %v744, %v682
        %v751 = vsel %vm715, %v744, %v683
        %v752 = vsel %vm716, %v744, %v684
        %v753 = vsel %vm717, %v744, %v685
        %v754 = vsel %vm718, %v744, %v686
        %v755 = vsel %vm719, %v744, %v687
        %v756 = vsel %vm720, %v744, %v688
        %v757 = vsel %vm721, %v744, %v689
        %v758 = vsel %vm722, %v744, %v690
        %v759 = vsel %vm723, %v744, %v691
        %v760 = vsel %vm724, %v744, %v692
        %v761 = vsel %vm725, %v744, %v693
        %v762 = vsel %vm726, %v744, %v694
        %v763 = vsel %vm727, %v744, %v695
        %v764 = vsel %vm728, %v744, %v696
        %v765 = vsel %vm729, %v744, %v697
        %v766 = vsel %vm730, %v744, %v698
        %v767 = vsel %vm731, %v744, %v699
        %v768 = vsel %vm732, %v744, %v700
        %v769 = vsel %vm733, %v744, %v701
        %v770 = vsel %vm734, %v744, %v702
        %v771 = vsel %vm735, %v744, %v703
        %v772 = vsel %vm736, %v744, %v704
        %v773 = vsel %vm737, %v744, %v705
        %v774 = vsel %vm738, %v744, %v706
        %v775 = vsel %vm739, %v744, %v707
        %v776 = vsel %vm740, %v744, %v708
        %vm777 = vcmp.eq.s32.totalorder %v540, 17
        %vm778 = vcmp.eq.s32.totalorder %v541, 17
        %vm779 = vcmp.eq.s32.totalorder %v542, 17
        %vm780 = vcmp.eq.s32.totalorder %v543, 17
        %vm781 = vcmp.eq.s32.totalorder %v544, 17
        %vm782 = vcmp.eq.s32.totalorder %v545, 17
        %vm783 = vcmp.eq.s32.totalorder %v546, 17
        %vm784 = vcmp.eq.s32.totalorder %v547, 17
        %vm785 = vcmp.eq.s32.totalorder %v548, 17
        %vm786 = vcmp.eq.s32.totalorder %v549, 17
        %vm787 = vcmp.eq.s32.totalorder %v550, 17
        %vm788 = vcmp.eq.s32.totalorder %v551, 17
        %vm789 = vcmp.eq.s32.totalorder %v552, 17
        %vm790 = vcmp.eq.s32.totalorder %v553, 17
        %vm791 = vcmp.eq.s32.totalorder %v554, 17
        %vm792 = vcmp.eq.s32.totalorder %v555, 17
        %vm793 = vcmp.eq.s32.totalorder %v556, 17
        %vm794 = vcmp.eq.s32.totalorder %v557, 17
        %vm795 = vcmp.eq.s32.totalorder %v558, 17
        %vm796 = vcmp.eq.s32.totalorder %v559, 17
        %vm797 = vcmp.eq.s32.totalorder %v560, 17
        %vm798 = vcmp.eq.s32.totalorder %v561, 17
        %vm799 = vcmp.eq.s32.totalorder %v562, 17
        %vm800 = vcmp.eq.s32.totalorder %v563, 17
        %vm801 = vcmp.eq.s32.totalorder %v564, 17
        %vm802 = vcmp.eq.s32.totalorder %v565, 17
        %vm803 = vcmp.eq.s32.totalorder %v566, 17
        %vm804 = vcmp.eq.s32.totalorder %v567, 17
        %vm805 = vcmp.eq.s32.totalorder %v568, 17
        %vm806 = vcmp.eq.s32.totalorder %v569, 17
        %vm807 = vcmp.eq.s32.totalorder %v570, 17
        %vm808 = vcmp.eq.s32.totalorder %v571, 17
        %v809 = vlaneseq
        %v810 = vshrl.u32 %v809, 7
        %v811 = vsub.s32 3, %v810
        %v812 = vrot.slane %v572, %v811
        %v813 = vsel %vm777, %v812, %v745
        %v814 = vsel %vm778, %v812, %v746
        %v815 = vsel %vm779, %v812, %v747
        %v816 = vsel %vm780, %v812, %v748
        %v817 = vsel %vm781, %v812, %v749
        %v818 = vsel %vm782, %v812, %v750
        %v819 = vsel %vm783, %v812, %v751
        %v820 = vsel %vm784, %v812, %v752
        %v821 = vsel %vm785, %v812, %v753
        %v822 = vsel %vm786, %v812, %v754
        %v823 = vsel %vm787, %v812, %v755
        %v824 = vsel %vm788, %v812, %v756
        %v825 = vsel %vm789, %v812, %v757
        %v826 = vsel %vm790, %v812, %v758
        %v827 = vsel %vm791, %v812, %v759
        %v828 = vsel %vm792, %v812, %v760
        %v829 = vsel %vm793, %v812, %v761
        %v830 = vsel %vm794, %v812, %v762
        %v831 = vsel %vm795, %v812, %v763
        %v832 = vsel %vm796, %v812, %v764
        %v833 = vsel %vm797, %v812, %v765
        %v834 = vsel %vm798, %v812, %v766
        %v835 = vsel %vm799, %v812, %v767
        %v836 = vsel %vm800, %v812, %v768
        %v837 = vsel %vm801, %v812, %v769
        %v838 = vsel %vm802, %v812, %v770
        %v839 = vsel %vm803, %v812, %v771
        %v840 = vsel %vm804, %v812, %v772
        %v841 = vsel %vm805, %v812, %v773
        %v842 = vsel %vm806, %v812, %v774
        %v843 = vsel %vm807, %v812, %v775
        %v844 = vsel %vm808, %v812, %v776
        %v845 = vld [vmem:[%s6] sm:$0xf]
        %847 = vset.pattern.permute.xlu0 0
        %848 = vperm.xlu0 %847, %v845
        %v849 = vpop.permute.xlu0 %848
        %851 = vmatprep.subr.mxu0 0.0
        %852 = vmatpush1.msra.mxu0 %v813
        %853 = vmatprep.subr.mxu0 0.0
        %854 = vmatpush1.msra.mxu0 %v814
        %855 = vmatprep.subr.mxu0 0.0
        %856 = vmatpush1.msra.mxu0 %v815
        %857 = vmatprep.subr.mxu0 0.0
        %858 = vmatpush1.msra.mxu0 %v816
        %859 = vmatprep.subr.mxu0 0.0
        %860 = vmatpush1.msra.mxu0 %v817
        %861 = vmatprep.subr.mxu0 0.0
        %862 = vmatpush1.msra.mxu0 %v818
        %863 = vmatprep.subr.mxu0 0.0
        %864 = vmatpush1.msra.mxu0 %v819
        %865 = vmatprep.subr.mxu0 0.0
        %866 = vmatpush1.msra.mxu0 %v820
        %867 = vmatprep.subr.mxu0 0.0
        %868 = vmatpush1.msra.mxu0 %v821
        %869 = vmatprep.subr.mxu0 0.0
        %870 = vmatpush1.msra.mxu0 %v822
        %871 = vmatprep.subr.mxu0 0.0
        %872 = vmatpush1.msra.mxu0 %v823
        %873 = vmatprep.subr.mxu0 0.0
        %874 = vmatpush1.msra.mxu0 %v824
        %875 = vmatprep.subr.mxu0 0.0
        %876 = vmatpush1.msra.mxu0 %v825
        %877 = vmatprep.subr.mxu0 0.0
        %878 = vmatpush1.msra.mxu0 %v826
        %879 = vmatprep.subr.mxu0 0.0
        %880 = vmatpush1.msra.mxu0 %v827
        %881 = vmatprep.subr.mxu0 0.0
        %882 = vmatpush1.msra.mxu0 %v828
        %883 = vmatprep.subr.mxu0 0.0
        %884 = vmatpush1.msra.mxu0 %v829
        %885 = vmatprep.subr.mxu0 0.0
        %886 = vmatpush1.msra.mxu0 %v830
        %887 = vmatprep.subr.mxu0 0.0
        %888 = vmatpush1.msra.mxu0 %v831
        %889 = vmatprep.subr.mxu0 0.0
        %890 = vmatpush1.msra.mxu0 %v832
        %891 = vmatprep.subr.mxu0 0.0
        %892 = vmatpush1.msra.mxu0 %v833
        %893 = vmatprep.subr.mxu0 0.0
        %894 = vmatpush1.msra.mxu0 %v834
        %895 = vmatprep.subr.mxu0 0.0
        %896 = vmatpush1.msra.mxu0 %v835
        %897 = vmatprep.subr.mxu0 0.0
        %898 = vmatpush1.msra.mxu0 %v836
        %899 = vmatprep.subr.mxu0 0.0
        %900 = vmatpush1.msra.mxu0 %v837
        %901 = vmatprep.subr.mxu0 0.0
        %902 = vmatpush1.msra.mxu0 %v838
        %903 = vmatprep.subr.mxu0 0.0
        %904 = vmatpush1.msra.mxu0 %v839
        %905 = vmatprep.subr.mxu0 0.0
        %906 = vmatpush1.msra.mxu0 %v840
        %907 = vmatprep.subr.mxu0 0.0
        %908 = vmatpush1.msra.mxu0 %v841
        %909 = vmatprep.subr.mxu0 0.0
        %910 = vmatpush1.msra.mxu0 %v842
        %911 = vmatprep.subr.mxu0 0.0
        %912 = vmatpush1.msra.mxu0 %v843
        %913 = vmatprep.subr.mxu0 0.0
        %914 = vmatpush1.msra.mxu0 %v844
        %915 = vmatprep.mubr.f32.mxu0 %v500
        %916 = vmatmul.mubr.f32.gmra.mrb[0].mxu0 %v498
        %v917 = vpop.f32.mrb[0].mxu0
        %v918 = vadd.f32 %v849, %v917
        %v919 = vpop.f32.mrb[0].mxu0
        %920 = vdwg.mxu0
        %vm921 = vcmask 519168
        %922 = vst.msk [vmem:[%s310] sm:$0xf] %vm921, %v918
        %s923 = sand.u32 %s196, 1
        %s924 = scalar_lea.sflag [#allocation3], %s923
        %s925 = sand.u32 %s196, 1
        %s926 = smul.addr %s925, 4
        %s927 = scalar_lea.vmem [#allocation2], %s926
        // Predicated region
        $region49: #{point_head_forward.1} parent=47 // pred_check
          %p928 = pneg %p206
        $region50: #{point_head_forward.1} parent=47 // pred_check_branch
          %930 = sbr.rel (%p928) target = $region52
        $region51: #{point_head_forward.1} parent=47 // pred_region
          %s932 = ssub.s32 64, 64
          %933 = vsyncadd %s924, %s932
          %s934 = smul.addr %s21, 64
          %s935 = scalar_lea.hbm %s7, %s934
          %s937 = sshll.u32 %s927, 4
          %s938 = int_to_ptr.vmem [resolvable:$true] %s937
          %940 = dma.vmem_to_hbm [thread:$0]  %s938, 64, %s935, %s924
        $region52: #{point_head_forward.1} parent=47 // pred_fallthru
          _
      $region48: #{point_head_forward.1} parent=5 // pred_fallthru
        _
      %p941 = scmp.le.s32.totalorder 2, %s16
      // Predicated region
      $region53: #{point_head_forward.1} parent=5 // pred_check
        %p942 = pneg %p941
      $region54: #{point_head_forward.1} parent=5 // pred_check_branch
        %944 = sbr.rel (%p942) target = $region56
      $region55: #{point_head_forward.1} parent=5 // pred_region
        %s945 = ssub.s32 %s16, 2
        // Predicated region
        $region57: #{point_head_forward.1} parent=55 // pred_check
          %p946 = pneg %p212
        $region58: #{point_head_forward.1} parent=55 // pred_check_branch
          %948 = sbr.rel (%p946) target = $region60
        $region59: #{point_head_forward.1} parent=55 // pred_region
          %s949 = sand.u32 %s197, 1
          %s950 = scalar_lea.sflag [#allocation3], %s949
          %s951 = sand.u32 %s197, 1
          %s952 = smul.addr %s951, 4
          %s953 = scalar_lea.vmem [#allocation2], %s952
          %954 = dma.done %s950, 64
        $region60: #{point_head_forward.1} parent=55 // pred_fallthru
          _
      $region56: #{point_head_forward.1} parent=5 // pred_fallthru
        _
    $region6: #{point_head_forward.1} parent=1 // loop_footer
      %s20 = sadd.s32 1, %s16
    $region7: #{point_head_forward.1} parent=1 // loop_footer_branch
      %15 = sbr.rel target = $region3
    $region8: #{point_head_forward.1} parent=1 // loop_exit
      _
    %955 = vsyncpa [#allocation3], 1
    %s956 = scalar_lea.sflag [#allocation3], 1
    %957 = vsyncpa %s956, 1

</llo_original>
